<compile_context>
chip_gen: v6e
topology: v6e:2x2x1
jax: 0.10.0
libtpu: 0.0.40
codegen_flags: <defaults>
</compile_context>

<pallas_src>
import jax
import jax.numpy as jnp
from jax.experimental import pallas as pl
from jax.experimental.pallas import tpu as pltpu

EMBEDDING_DIM = 32
NUM_FILTERS = 16
FILTER_SIZES = (2, 3, 4)
NUM_CLASSES = 3
CF = NUM_CLASSES * NUM_FILTERS          # per-group fused conv channels (48)
NG = len(FILTER_SIZES)                  # number of filter-size groups (3)
NGCF = NG * CF                          # fused conv output width (144)
FS_MAX = max(FILTER_SIZES)              # im2col window depth (4) -> K = FS_MAX*E = 128
OUT_LANES = 128                         # class dim padded to a full lane tile for dense stores
NEG_MASK = -1e30                        # additive mask for invalid time positions
MAX_BATCH_BLOCK = 256                   # batch rows per grid step (sweep 256-1024)


def _ocn_kernel(x_ref, w_ref, b_ref, hw_ref, hb_ref, mask_ref, out_ref):
    """Fused im2col conv (one K=128 matmul) + mask + max-pool + bias/ReLU + head + softmax.

    x_ref   : [bb*S, E]        flattened batch block of embeddings (f32)
    w_ref   : [FS_MAX*E, NGCF] fused conv weights, bf16 (zero rows for unused shifts)
    b_ref   : [1, NGCF]        conv biases (classes x filters packed), f32
    hw_ref  : [NGCF, C]        block-diagonal per-stance head weights, bf16
    hb_ref  : [1, C]           head bias, f32
    mask_ref: [S, NGCF]        additive time mask (0 valid / -1e30 invalid), f32
    out_ref : [bb, 128]        stance probabilities in the first C lanes (rest zero)
    """
    s, width = mask_ref.shape
    n, e = x_ref.shape
    bb = n // s
    c = hw_ref.shape[-1]
    fs_max = w_ref.shape[0] // e

    # Build the K = fs_max*E im2col window: row r gets [x[r], x[r+1], ..., x[r+fs_max-1]].
    # Row shifts wrap within the block; wrapped positions are either multiplied by the
    # zero-padded weight rows or masked to -1e30 before the pool, so they never matter.
    x2 = x_ref[...]                                                    # [n, E] f32
    parts = [x2]
    for j in range(1, fs_max):
        parts.append(jnp.concatenate([x2[j:, :], x2[:j, :]], axis=0))
    win = jnp.concatenate(parts, axis=-1).astype(jnp.bfloat16)         # [n, fs_max*E]

    # One fused MXU matmul: [n, 128] @ [128, 144] -> f32 accumulate.
    conv = jnp.dot(win, w_ref[...], preferred_element_type=jnp.float32)  # [n, NGCF]

    # Mask invalid tail positions per filter-size group, then max-pool over time.
    conv = conv.reshape(bb, s, width) + mask_ref[...]                  # [bb, S, NGCF]
    pooled = jnp.max(conv, axis=1)                                     # [bb, NGCF]

    # Bias + ReLU AFTER the pool (monotone, time-invariant bias => equivalent).
    feat = jnp.maximum(pooled + b_ref[...], 0.0)                       # [bb, NGCF]
    # dropout: identity (inference mode)

    # Per-stance linear head (block-diagonal, fused over classes) + exact softmax.
    logits = jnp.dot(feat.astype(jnp.bfloat16), hw_ref[...],
                     preferred_element_type=jnp.float32) + hb_ref[...]  # [bb, C]
    m = jnp.max(logits, axis=-1, keepdims=True)
    ex = jnp.exp(logits - m)
    probs = ex / jnp.sum(ex, axis=-1, keepdims=True)

    # Lane-dense writeback: pad classes to a full 128-lane tile (wrapper slices [:, :C]).
    pad = out_ref.shape[-1] - c
    out_ref[...] = jnp.concatenate(
        [probs, jnp.zeros((bb, pad), jnp.float32)], axis=-1)


def _pack_params(conv_w, conv_b, lin_w, lin_b, seq_len):
    """Pack per-class parameters into the fused-kernel layout.

    conv_w[k]: [C, fs_k*E, F]   conv_b[k]: [C, F]
    lin_w:     [C, NG*F]        lin_b:     [1, C]
    Returns (w_fused [FS_MAX*E, NGCF] bf16, b_all [1, NGCF] f32,
             hw_all [NGCF, C] bf16, hb [1, C] f32, mask [S, NGCF] f32).
    Column order everywhere is (filter-size group k, class c, filter f).
    """
    e, f, c = EMBEDDING_DIM, NUM_FILTERS, NUM_CLASSES
    w_cols, b_cols, hw_rows, mask_cols = [], [], [], []
    for k, fs in enumerate(FILTER_SIZES):
        # [C, fs*E, F] -> [C, fs, E, F] -> [fs, E, C, F]; zero-pad shifts to FS_MAX.
        w = conv_w[k].reshape(c, fs, e, f).transpose(1, 2, 0, 3)
        w = jnp.pad(w, ((0, FS_MAX - fs), (0, 0), (0, 0), (0, 0)))
        w_cols.append(w.reshape(FS_MAX * e, c * f))
        b_cols.append(conv_b[k].reshape(c * f))
        # Block-diagonal head slice for this filter size: [C*F, C].
        hw = jnp.zeros((c, f, c), dtype=lin_w.dtype)
        for ci in range(c):
            hw = hw.at[ci, :, ci].set(lin_w[ci, k * f:(k + 1) * f])
        hw_rows.append(hw.reshape(c * f, c))
        # Additive time mask: 0 for valid positions (t <= S - fs), -1e30 for the tail.
        t_valid = seq_len - fs + 1
        col_mask = jnp.where(jnp.arange(seq_len) < t_valid, 0.0, NEG_MASK)
        mask_cols.append(jnp.broadcast_to(col_mask[:, None].astype(jnp.float32),
                                          (seq_len, c * f)))
    w_fused = jnp.concatenate(w_cols, axis=1).astype(jnp.bfloat16)     # [FS_MAX*E, NGCF]
    b_all = jnp.concatenate(b_cols, axis=0)[None, :]                   # [1, NGCF]
    hw_all = jnp.concatenate(hw_rows, axis=0).astype(jnp.bfloat16)     # [NGCF, C]
    mask = jnp.concatenate(mask_cols, axis=1)                          # [S, NGCF]
    return w_fused, b_all, hw_all, lin_b, mask


@jax.jit
def opinion_conv_forward(x, conv_w, conv_b, lin_w, lin_b):
    """Forward pass.

    x:      [B, S, E] float32
    conv_w: tuple of 3 arrays, conv_w[k] has shape [C, fs_k*E, F]
    conv_b: tuple of 3 arrays, conv_b[k] has shape [C, F]
    lin_w:  [C, NG*F]
    lin_b:  [1, C]
    returns stance probabilities [B, C]
    """
    b, s, e = x.shape
    if s < max(FILTER_SIZES):
        raise ValueError("seq_len must be >= max(FILTER_SIZES)")

    w_fused, b_all, hw_all, hb, mask = _pack_params(conv_w, conv_b, lin_w, lin_b, s)

    # Batch-block grid: big blocks amortize per-step overhead; the "parallel" axis shards
    # across the two TensorCores on v7x once there are >= 2 blocks.
    if b <= MAX_BATCH_BLOCK:
        bb, bp = b, b
    else:
        bb = MAX_BATCH_BLOCK
        bp = pl.cdiv(b, bb) * bb
        x = jnp.pad(x, ((0, bp - b), (0, 0), (0, 0)))
    x_flat = x.reshape(bp * s, e)                                      # 2-D, lane dim = E

    out = pl.pallas_call(
        _ocn_kernel,
        out_shape=jax.ShapeDtypeStruct((bp, OUT_LANES), jnp.float32),
        grid=(bp // bb,),
        in_specs=[
            pl.BlockSpec((bb * s, e), lambda i: (i, 0)),     # x: batch-blocked
            pl.BlockSpec(w_fused.shape, lambda i: (0, 0)),   # weights: grid-invariant
            pl.BlockSpec(b_all.shape, lambda i: (0, 0)),
            pl.BlockSpec(hw_all.shape, lambda i: (0, 0)),
            pl.BlockSpec(hb.shape, lambda i: (0, 0)),
            pl.BlockSpec(mask.shape, lambda i: (0, 0)),
        ],
        out_specs=pl.BlockSpec((bb, OUT_LANES), lambda i: (i, 0)),
        compiler_params=pltpu.CompilerParams(
            dimension_semantics=("parallel",)),
        # NOTE: at bb=256 every per-step buffer fits the default scoped-VMEM limit on
        # v5e/v6e/v7x; raise vmem_limit_bytes if MAX_BATCH_BLOCK is swept above ~256.
    )(x_flat, w_fused, b_all, hw_all, hb, mask)
    return out[:b, :NUM_CLASSES]


def make_params(key):
    """Deterministic parameter init matching the nn.Module shapes.

    Conv2d(1, F, kernel_size=(fs, E)) weight [F, 1, fs, E] is stored flattened
    & transposed as [fs*E, F]; Linear(NG*F, 1) weights stacked over classes.
    """
    keys = jax.random.split(key, 2 * NUM_CLASSES * len(FILTER_SIZES) + 2 * NUM_CLASSES)
    ki = iter(keys)
    conv_w, conv_b = [], []
    for fs in FILTER_SIZES:
        w_cls, b_cls = [], []
        for _ in range(NUM_CLASSES):
            w = 0.05 * jax.random.normal(next(ki), (NUM_FILTERS, 1, fs, EMBEDDING_DIM),
                                         dtype=jnp.float32)
            bia = 0.05 * jax.random.normal(next(ki), (NUM_FILTERS,), dtype=jnp.float32)
            # [F, 1, fs, E] -> [F, fs*E] -> [fs*E, F]
            w_cls.append(w.reshape(NUM_FILTERS, fs * EMBEDDING_DIM).T)
            b_cls.append(bia)
        conv_w.append(jnp.stack(w_cls, axis=0))     # [C, fs*E, F]
        conv_b.append(jnp.stack(b_cls, axis=0))     # [C, F]
    lin_w, lin_b = [], []
    feat_dim = len(FILTER_SIZES) * NUM_FILTERS
    for _ in range(NUM_CLASSES):
        lin_w.append(0.05 * jax.random.normal(next(ki), (feat_dim,), dtype=jnp.float32))
        lin_b.append(0.05 * jax.random.normal(next(ki), (), dtype=jnp.float32))
    lin_w = jnp.stack(lin_w, axis=0)                # [C, NG*F]
    lin_b = jnp.stack(lin_b, axis=0)[None, :]       # [1, C]
    return tuple(conv_w), tuple(conv_b), lin_w, lin_b


def _im2col(x, fs):
    """x: [B, S, E] -> windows [B, S-fs+1, fs*E] (reference only)."""
    b, s, e = x.shape
    t_out = s - fs + 1
    return jnp.stack(
        [x[:, t:t + fs, :].reshape(b, fs * e) for t in range(t_out)], axis=1)


def reference_forward(x, conv_w, conv_b, lin_w, lin_b):
    """Pure-JAX reference (mirrors the PyTorch forward, eval mode)."""
    scores = []
    for c in range(NUM_CLASSES):
        pooled = []
        for k, fs in enumerate(FILTER_SIZES):
            win = _im2col(x, fs)                         # [B, T, fs*E]
            s = jnp.einsum("btk,kf->btf", win, conv_w[k][c]) + conv_b[k][c][None, None, :]
            r = jax.nn.relu(s)
            pooled.append(jnp.max(r, axis=1))            # [B, F]
        feat = jnp.concatenate(pooled, axis=1)           # [B, NG*F]
        scores.append(feat @ lin_w[c] + lin_b[0, c])     # [B]
    logits = jnp.stack(scores, axis=1)                   # [B, C]
    return jax.nn.softmax(logits, axis=1)


if __name__ == "__main__":
    key = jax.random.PRNGKey(0)
    k_x, k_p = jax.random.split(key)

    B, S = 2, 8
    x = jax.random.normal(k_x, (B, S, EMBEDDING_DIM), dtype=jnp.float32)

    conv_w, conv_b, lin_w, lin_b = make_params(k_p)

    probs = opinion_conv_forward(x, conv_w, conv_b, lin_w, lin_b)
    probs = jax.block_until_ready(probs)

    ref = reference_forward(x, conv_w, conv_b, lin_w, lin_b)
    assert probs.shape == (B, NUM_CLASSES)
    assert jnp.allclose(jnp.sum(probs, axis=1), 1.0, atol=1e-5)
    # bf16 MXU operands (f32 accumulation) -> relaxed elementwise tolerance vs f32 reference.
    assert jnp.allclose(probs, ref, atol=5e-3, rtol=2e-2), (probs, ref)

    print("KERNEL_OK")
</pallas_src>

<mosaic_0001>
module attributes {stable_mosaic.version = 11 : i64} {
  func.func @_ocn_kernel(%arg0: i32, %arg1: memref<16x32xf32, #tpu.memory_space<vmem>>, %arg2: memref<128x144xbf16, #tpu.memory_space<vmem>>, %arg3: memref<1x144xf32, #tpu.memory_space<vmem>>, %arg4: memref<144x3xbf16, #tpu.memory_space<vmem>>, %arg5: memref<1x3xf32, #tpu.memory_space<vmem>>, %arg6: memref<8x144xf32, #tpu.memory_space<vmem>>, %arg7: memref<2x128xf32, #tpu.memory_space<vmem>>) attributes {dimension_semantics = [#tpu.dimension_semantics<parallel>], iteration_bounds = array<i64: 1>, scalar_prefetch = 0 : i64, scratch_operands = 0 : i64, tpu.core_type = #tpu.core_type<tc>, window_params = [{transform_indices = @transform_0, window_bounds = array<i64: 16, 32>}, {pipeline_mode = #tpu.pipeline_mode<synchronous>, transform_indices = @transform_1, window_bounds = array<i64: 128, 144>}, {pipeline_mode = #tpu.pipeline_mode<synchronous>, transform_indices = @transform_2, window_bounds = array<i64: 1, 144>}, {pipeline_mode = #tpu.pipeline_mode<synchronous>, transform_indices = @transform_3, window_bounds = array<i64: 144, 3>}, {pipeline_mode = #tpu.pipeline_mode<synchronous>, transform_indices = @transform_4, window_bounds = array<i64: 1, 3>}, {pipeline_mode = #tpu.pipeline_mode<synchronous>, transform_indices = @transform_5, window_bounds = array<i64: 8, 144>}, {transform_indices = @transform_6, window_bounds = array<i64: 2, 128>}]} {
    %c0 = arith.constant 0 : index
    %c0_0 = arith.constant 0 : index
    %0 = vector.load %arg1[%c0, %c0_0] : memref<16x32xf32, #tpu.memory_space<vmem>>, vector<16x32xf32>
    %1 = vector.extract_strided_slice %0 {offsets = [1, 0], sizes = [15, 32], strides = [1, 1]} : vector<16x32xf32> to vector<15x32xf32>
    %2 = vector.extract_strided_slice %0 {offsets = [0, 0], sizes = [1, 32], strides = [1, 1]} : vector<16x32xf32> to vector<1x32xf32>
    %3 = tpu.concatenate %1, %2 in 0 : vector<15x32xf32>, vector<1x32xf32> -> vector<16x32xf32>
    %4 = vector.extract_strided_slice %0 {offsets = [2, 0], sizes = [14, 32], strides = [1, 1]} : vector<16x32xf32> to vector<14x32xf32>
    %5 = vector.extract_strided_slice %0 {offsets = [0, 0], sizes = [2, 32], strides = [1, 1]} : vector<16x32xf32> to vector<2x32xf32>
    %6 = tpu.concatenate %4, %5 in 0 : vector<14x32xf32>, vector<2x32xf32> -> vector<16x32xf32>
    %7 = vector.extract_strided_slice %0 {offsets = [3, 0], sizes = [13, 32], strides = [1, 1]} : vector<16x32xf32> to vector<13x32xf32>
    %8 = vector.extract_strided_slice %0 {offsets = [0, 0], sizes = [3, 32], strides = [1, 1]} : vector<16x32xf32> to vector<3x32xf32>
    %9 = tpu.concatenate %7, %8 in 0 : vector<13x32xf32>, vector<3x32xf32> -> vector<16x32xf32>
    %10 = tpu.concatenate %0, %3, %6, %9 in 1 : vector<16x32xf32>, vector<16x32xf32>, vector<16x32xf32>, vector<16x32xf32> -> vector<16x128xf32>
    %11 = arith.truncf %10 : vector<16x128xf32> to vector<16x128xbf16>
    %c0_1 = arith.constant 0 : index
    %c0_2 = arith.constant 0 : index
    %12 = vector.load %arg2[%c0_1, %c0_2] : memref<128x144xbf16, #tpu.memory_space<vmem>>, vector<128x144xbf16>
    %cst = arith.constant dense<0.000000e+00> : vector<16x144xf32>
    %13 = tpu.matmul %11, %12, %cst {dimension_numbers = #tpu.dot_dimension_numbers<[1], [0], [0], [1], [0, 0, 1, 1], [], []>} : vector<16x128xbf16>, vector<128x144xbf16>, vector<16x144xf32> -> vector<16x144xf32>
    %14 = vector.shape_cast %13 : vector<16x144xf32> to vector<2x8x144xf32>
    %c0_3 = arith.constant 0 : index
    %c0_4 = arith.constant 0 : index
    %15 = vector.load %arg6[%c0_3, %c0_4] : memref<8x144xf32, #tpu.memory_space<vmem>>, vector<8x144xf32>
    %16 = vector.shape_cast %15 : vector<8x144xf32> to vector<1x8x144xf32>
    %17 = vector.broadcast %16 : vector<1x8x144xf32> to vector<2x8x144xf32>
    %18 = arith.addf %14, %17 : vector<2x8x144xf32>
    %cst_5 = arith.constant dense<0xFF800000> : vector<2x144xf32>
    %19 = vector.multi_reduction <maximumf>, %18, %cst_5 [1] : vector<2x8x144xf32> to vector<2x144xf32>
    %c0_6 = arith.constant 0 : index
    %c0_7 = arith.constant 0 : index
    %20 = vector.load %arg3[%c0_6, %c0_7] : memref<1x144xf32, #tpu.memory_space<vmem>>, vector<1x144xf32>
    %21 = vector.broadcast %20 : vector<1x144xf32> to vector<2x144xf32>
    %22 = arith.addf %19, %21 : vector<2x144xf32>
    %cst_8 = arith.constant 0.000000e+00 : f32
    %23 = vector.broadcast %cst_8 : f32 to vector<2x144xf32>
    %24 = arith.maximumf %22, %23 : vector<2x144xf32>
    %25 = arith.truncf %24 : vector<2x144xf32> to vector<2x144xbf16>
    %c0_9 = arith.constant 0 : index
    %c0_10 = arith.constant 0 : index
    %26 = vector.load %arg4[%c0_9, %c0_10] : memref<144x3xbf16, #tpu.memory_space<vmem>>, vector<144x3xbf16>
    %cst_11 = arith.constant dense<0.000000e+00> : vector<2x3xf32>
    %27 = tpu.matmul %25, %26, %cst_11 {dimension_numbers = #tpu.dot_dimension_numbers<[1], [0], [0], [1], [0, 0, 1, 1], [], []>} : vector<2x144xbf16>, vector<144x3xbf16>, vector<2x3xf32> -> vector<2x3xf32>
    %c0_12 = arith.constant 0 : index
    %c0_13 = arith.constant 0 : index
    %28 = vector.load %arg5[%c0_12, %c0_13] : memref<1x3xf32, #tpu.memory_space<vmem>>, vector<1x3xf32>
    %29 = vector.broadcast %28 : vector<1x3xf32> to vector<2x3xf32>
    %30 = arith.addf %27, %29 : vector<2x3xf32>
    %cst_14 = arith.constant dense<0xFF800000> : vector<2xf32>
    %31 = vector.multi_reduction <maximumf>, %30, %cst_14 [1] : vector<2x3xf32> to vector<2xf32>
    %32 = vector.shape_cast %31 : vector<2xf32> to vector<2x1xf32>
    %33 = vector.broadcast %32 : vector<2x1xf32> to vector<2x3xf32>
    %34 = arith.subf %30, %33 : vector<2x3xf32>
    %35 = math.exp %34 : vector<2x3xf32>
    %cst_15 = arith.constant dense<0.000000e+00> : vector<2xf32>
    %36 = vector.multi_reduction <add>, %35, %cst_15 [1] : vector<2x3xf32> to vector<2xf32>
    %37 = vector.shape_cast %36 : vector<2xf32> to vector<2x1xf32>
    %38 = vector.broadcast %37 : vector<2x1xf32> to vector<2x3xf32>
    %39 = arith.divf %35, %38 : vector<2x3xf32>
    %cst_16 = arith.constant 0.000000e+00 : f32
    %40 = vector.broadcast %cst_16 : f32 to vector<2x125xf32>
    %41 = tpu.concatenate %39, %40 in 1 : vector<2x3xf32>, vector<2x125xf32> -> vector<2x128xf32>
    %c0_17 = arith.constant 0 : index
    %c0_18 = arith.constant 0 : index
    %42 = vector.load %arg7[%c0_17, %c0_18] : memref<2x128xf32, #tpu.memory_space<vmem>>, vector<2x128xf32>
    tpu.vector_store %arg7[%c0_17, %c0_18], %41 {strides = array<i32>} : memref<2x128xf32, #tpu.memory_space<vmem>>, vector<2x128xf32>,
    return
  }
  func.func @transform_0(%arg0: i32) -> (i32, i32) {
    %c0_i32 = arith.constant 0 : i32
    %c0_i32_0 = arith.constant 0 : i32
    return %arg0, %c0_i32 : i32, i32
  }
  func.func @transform_1(%arg0: i32) -> (i32, i32) {
    %c0_i32 = arith.constant 0 : i32
    %c0_i32_0 = arith.constant 0 : i32
    %c0_i32_1 = arith.constant 0 : i32
    return %c0_i32, %c0_i32_0 : i32, i32
  }
  func.func @transform_2(%arg0: i32) -> (i32, i32) {
    %c0_i32 = arith.constant 0 : i32
    %c0_i32_0 = arith.constant 0 : i32
    %c0_i32_1 = arith.constant 0 : i32
    return %c0_i32, %c0_i32_0 : i32, i32
  }
  func.func @transform_3(%arg0: i32) -> (i32, i32) {
    %c0_i32 = arith.constant 0 : i32
    %c0_i32_0 = arith.constant 0 : i32
    %c0_i32_1 = arith.constant 0 : i32
    return %c0_i32, %c0_i32_0 : i32, i32
  }
  func.func @transform_4(%arg0: i32) -> (i32, i32) {
    %c0_i32 = arith.constant 0 : i32
    %c0_i32_0 = arith.constant 0 : i32
    %c0_i32_1 = arith.constant 0 : i32
    return %c0_i32, %c0_i32_0 : i32, i32
  }
  func.func @transform_5(%arg0: i32) -> (i32, i32) {
    %c0_i32 = arith.constant 0 : i32
    %c0_i32_0 = arith.constant 0 : i32
    %c0_i32_1 = arith.constant 0 : i32
    return %c0_i32, %c0_i32_0 : i32, i32
  }
  func.func @transform_6(%arg0: i32) -> (i32, i32) {
    %c0_i32 = arith.constant 0 : i32
    %c0_i32_0 = arith.constant 0 : i32
    return %arg0, %c0_i32 : i32, i32
  }
}

</mosaic_0001>

<llo_original>
// kernel: opinion_conv_forward.1
$region0: #{opinion_conv_forward.1}
  #allocation0 [shape = 'u32[]', space=smem, size = 0x4, offset = 0x4, fixed_abs, tag = 'smem constant byte address 0x4 - core index']
  #allocation1 [shape = 'u32[144,128]{1,0:T(1,128)}', space=vmem, size = 0x12000, scoped, tag = 'internal scratch']
  %s0 = inlined_call_operand.vmem [shape: f32[16,32], index: 0, kind: input, shape index: {}]
  %s1 = inlined_call_operand.vmem [shape: bf16[128,144], index: 1, kind: input, shape index: {}]
  %s2 = inlined_call_operand.vmem [shape: f32[1,144], index: 2, kind: input, shape index: {}]
  %s3 = inlined_call_operand.vmem [shape: bf16[144,3], index: 3, kind: input, shape index: {}]
  %s4 = inlined_call_operand.vmem [shape: f32[1,3], index: 4, kind: input, shape index: {}]
  %s5 = inlined_call_operand.vmem [shape: f32[8,144], index: 5, kind: input, shape index: {}]
  %s6 = inlined_call_operand.hbm [shape: f32[2,128], index: 6, kind: output, shape index: {}]
  %s7 = sld [smem:[#allocation0]]
  $region34: #{opinion_conv_forward.1} parent=0
    _
  %s9 = ssub.s32 1, %s7
  %s10 = scalar_select 0, %s9, %s7
  $region1: #{opinion_conv_forward.1} parent=0
    #allocation2 [shape = 'u8[1024]{0}', space=vmem, size = 0x400, scoped, tag = 'output window, operand 0, single buffered']
    #allocation3 [shape = 's32[1]{0}', space=sflag, size = 0x4, scoped, tag = 'scoped memory for opinion_conv_forward.1']
    %11 = vsyncpa [#allocation3], 0
    // Predicated region
    $region2: #{opinion_conv_forward.1} parent=1 // pred_check
      _
    $region3: #{opinion_conv_forward.1} parent=1 // pred_check_branch
      %13 = sbr.rel (0) target = $region5
    $region4: #{opinion_conv_forward.1} parent=1 // pred_region
      _
    $region5: #{opinion_conv_forward.1} parent=1 // pred_fallthru
      _
    // Predicated region
    $region6: #{opinion_conv_forward.1} parent=1 // pred_check
      _
    $region7: #{opinion_conv_forward.1} parent=1 // pred_check_branch
      %15 = sbr.rel (0) target = $region9
    $region8: #{opinion_conv_forward.1} parent=1 // pred_region
      _
    $region9: #{opinion_conv_forward.1} parent=1 // pred_fallthru
      _
    // Predicated region
    $region10: #{opinion_conv_forward.1} parent=1 // pred_check
      _
    $region11: #{opinion_conv_forward.1} parent=1 // pred_check_branch
      %17 = sbr.rel (0) target = $region13
    $region12: #{opinion_conv_forward.1} parent=1 // pred_region
      _
    $region13: #{opinion_conv_forward.1} parent=1 // pred_fallthru
      _
    // Predicated region
    $region14: #{opinion_conv_forward.1} parent=1 // pred_check
      _
    $region15: #{opinion_conv_forward.1} parent=1 // pred_check_branch
      %19 = sbr.rel (0) target = $region17
    $region16: #{opinion_conv_forward.1} parent=1 // pred_region
      _
    $region17: #{opinion_conv_forward.1} parent=1 // pred_fallthru
      _
    // Predicated region
    $region18: #{opinion_conv_forward.1} parent=1 // pred_check
      _
    $region19: #{opinion_conv_forward.1} parent=1 // pred_check_branch
      %21 = sbr.rel (0) target = $region21
    $region20: #{opinion_conv_forward.1} parent=1 // pred_region
      _
    $region21: #{opinion_conv_forward.1} parent=1 // pred_fallthru
      _
    // Predicated region
    $region22: #{opinion_conv_forward.1} parent=1 // pred_check
      _
    $region23: #{opinion_conv_forward.1} parent=1 // pred_check_branch
      %23 = sbr.rel (0) target = $region25
    $region24: #{opinion_conv_forward.1} parent=1 // pred_region
      _
    $region25: #{opinion_conv_forward.1} parent=1 // pred_fallthru
      _
    %v25 = vld [vmem:[%s0] sm:$0xff]
    %v26 = vld [vmem:[%s0 + $0x8] sm:$0xff]
    %vm29 = vcmask 1046528
    %v30 = vrot.slane %v25, 1
    %v31 = vrot.slane %v26, 1
    %v32 = vsel %vm29, %v30, %v31
    %v35 = vsel %vm29, %v31, %v30
    %vm36 = vcmask 1045504
    %v37 = vrot.slane %v25, 2
    %v38 = vrot.slane %v26, 2
    %v39 = vsel %vm36, %v37, %v38
    %v42 = vsel %vm36, %v38, %v37
    %vm43 = vcmask 1044480
    %v44 = vrot.slane %v25, 3
    %v45 = vrot.slane %v26, 3
    %v46 = vsel %vm43, %v44, %v45
    %v49 = vsel %vm43, %v45, %v44
    %51 = vrot.lane.b32.xlu0 %v32, 32
    %v52 = vpop.permute.xlu0 %51
    %53 = vrot.lane.b32.xlu0 %v35, 32
    %v54 = vpop.permute.xlu0 %53
    %58 = vrot.lane.b32.xlu0 %v39, 64
    %v59 = vpop.permute.xlu0 %58
    %60 = vrot.lane.b32.xlu0 %v42, 64
    %v61 = vpop.permute.xlu0 %60
    %65 = vrot.lane.b32.xlu0 %v46, 96
    %v66 = vpop.permute.xlu0 %65
    %67 = vrot.lane.b32.xlu0 %v49, 96
    %v68 = vpop.permute.xlu0 %67
    %vm71 = vcmask 261120
    %v72 = vsel %vm71, %v25, %v52
    %v73 = vsel %vm71, %v26, %v54
    %vm74 = vcmask 523264
    %v75 = vsel %vm74, %v72, %v59
    %v76 = vsel %vm74, %v73, %v61
    %vm77 = vcmask 785408
    %v78 = vsel %vm77, %v75, %v66
    %v79 = vsel %vm77, %v76, %v68
    %v80 = vpack.c.bf16 %v79, %v78
    %v81 = vld [vmem:[%s1] sm:$0xff]
    %v82 = vld [vmem:[%s1 + $0x8] sm:$0xff]
    %v83 = vld [vmem:[%s1 + $0x10] sm:$0xff]
    %v84 = vld [vmem:[%s1 + $0x18] sm:$0xff]
    %v85 = vld [vmem:[%s1 + $0x20] sm:$0xff]
    %v86 = vld [vmem:[%s1 + $0x28] sm:$0xff]
    %v87 = vld [vmem:[%s1 + $0x30] sm:$0xff]
    %v88 = vld [vmem:[%s1 + $0x38] sm:$0xff]
    %v89 = vld [vmem:[%s1 + $0x40] sm:$0xff]
    %v90 = vld [vmem:[%s1 + $0x48] sm:$0xff]
    %v91 = vld [vmem:[%s1 + $0x50] sm:$0xff]
    %v92 = vld [vmem:[%s1 + $0x58] sm:$0xff]
    %v93 = vld [vmem:[%s1 + $0x60] sm:$0xff]
    %v94 = vld [vmem:[%s1 + $0x68] sm:$0xff]
    %v95 = vld [vmem:[%s1 + $0x70] sm:$0xff]
    %v96 = vld [vmem:[%s1 + $0x78] sm:$0xff]
    %v113 = vunpack.c.l.b16 %v81
    %v114 = vunpack.c.h.b16 %v81
    %v115 = vunpack.c.l.b16 %v82
    %v116 = vunpack.c.h.b16 %v82
    %v117 = vunpack.c.l.b16 %v83
    %v118 = vunpack.c.h.b16 %v83
    %v119 = vunpack.c.l.b16 %v84
    %v120 = vunpack.c.h.b16 %v84
    %v121 = vunpack.c.l.b16 %v85
    %v122 = vunpack.c.h.b16 %v85
    %v123 = vunpack.c.l.b16 %v86
    %v124 = vunpack.c.h.b16 %v86
    %v125 = vunpack.c.l.b16 %v87
    %v126 = vunpack.c.h.b16 %v87
    %v127 = vunpack.c.l.b16 %v88
    %v128 = vunpack.c.h.b16 %v88
    %v129 = vunpack.c.l.b16 %v89
    %v130 = vunpack.c.h.b16 %v89
    %v131 = vunpack.c.l.b16 %v90
    %v132 = vunpack.c.h.b16 %v90
    %v133 = vunpack.c.l.b16 %v91
    %v134 = vunpack.c.h.b16 %v91
    %v135 = vunpack.c.l.b16 %v92
    %v136 = vunpack.c.h.b16 %v92
    %v137 = vunpack.c.l.b16 %v93
    %v138 = vunpack.c.h.b16 %v93
    %v139 = vunpack.c.l.b16 %v94
    %v140 = vunpack.c.h.b16 %v94
    %v141 = vunpack.c.l.b16 %v95
    %v142 = vunpack.c.h.b16 %v95
    %v143 = vunpack.c.l.b16 %v96
    %v144 = vunpack.c.h.b16 %v96
    %v145 = vpack.c.b16 %v115, %v113
    %v146 = vpack.c.b16 %v116, %v114
    %v147 = vpack.c.b16 %v119, %v117
    %v148 = vpack.c.b16 %v120, %v118
    %v149 = vpack.c.b16 %v123, %v121
    %v150 = vpack.c.b16 %v124, %v122
    %v151 = vpack.c.b16 %v127, %v125
    %v152 = vpack.c.b16 %v128, %v126
    %v153 = vpack.c.b16 %v131, %v129
    %v154 = vpack.c.b16 %v132, %v130
    %v155 = vpack.c.b16 %v135, %v133
    %v156 = vpack.c.b16 %v136, %v134
    %v157 = vpack.c.b16 %v139, %v137
    %v158 = vpack.c.b16 %v140, %v138
    %v159 = vpack.c.b16 %v143, %v141
    %v160 = vpack.c.b16 %v144, %v142
    %177 = vmatprep.subr.bf16.mxu0 %v160
    %178 = vmatpush1.bf16.msra.mxu0 %v159
    %179 = vmatprep.subr.bf16.mxu0 %v158
    %180 = vmatpush1.bf16.msra.mxu0 %v157
    %181 = vmatprep.subr.bf16.mxu0 %v156
    %182 = vmatpush1.bf16.msra.mxu0 %v155
    %183 = vmatprep.subr.bf16.mxu0 %v154
    %184 = vmatpush1.bf16.msra.mxu0 %v153
    %185 = vmatprep.subr.bf16.mxu0 %v152
    %186 = vmatpush1.bf16.msra.mxu0 %v151
    %187 = vmatprep.subr.bf16.mxu0 %v150
    %188 = vmatpush1.bf16.msra.mxu0 %v149
    %189 = vmatprep.subr.bf16.mxu0 %v148
    %190 = vmatpush1.bf16.msra.mxu0 %v147
    %191 = vmatprep.subr.bf16.mxu0 %v146
    %192 = vmatpush1.bf16.msra.mxu0 %v145
    %193 = vmatprep.subr.bf16.mxu0 0
    %194 = vmatpush2.bf16.msra.mxu0 0
    %195 = vmatprep.subr.bf16.mxu0 0
    %196 = vmatpush2.bf16.msra.mxu0 0
    %197 = vmatprep.subr.bf16.mxu0 0
    %198 = vmatpush2.bf16.msra.mxu0 0
    %199 = vmatprep.subr.bf16.mxu0 0
    %200 = vmatpush2.bf16.msra.mxu0 0
    %201 = vmatprep.subr.bf16.mxu0 0
    %202 = vmatpush2.bf16.msra.mxu0 0
    %203 = vmatprep.subr.bf16.mxu0 0
    %204 = vmatpush2.bf16.msra.mxu0 0
    %205 = vmatprep.subr.bf16.mxu0 0
    %206 = vmatpush2.bf16.msra.mxu0 0
    %207 = vmatprep.subr.bf16.mxu0 0
    %208 = vmatpush2.bf16.msra.mxu0 0
    %209 = vmatprep.mubr.bf16.mxu0 0
    %210 = vmatmul.mubr.bf16.gmra.mxu0 %v80
    %v211 = vpop.f32.mrf.mxu0
    %v212 = vadd.f32 0.0, %v211
    %v213 = vpop.f32.mrf.mxu0
    %v214 = vadd.f32 0.0, %v213
    %v215 = vpop.f32.mrf.mxu0
    %v216 = vadd.f32 0.0, %v215
    %v217 = vpop.f32.mrf.mxu0
    %v218 = vadd.f32 0.0, %v217
    %219 = vdwg.mxu0
    %v220 = vld [vmem:[%s5] sm:$0xff]
    %v221 = vld [vmem:[%s5 + $0x8] sm:$0xff]
    %v222 = vadd.f32 %v212, %v220
    %v223 = vadd.f32 %v214, %v221
    %v224 = vadd.f32 %v216, %v220
    %v225 = vadd.f32 %v218, %v221
    %v226 = vrot.slane %v222, 4
    %v227 = vmax.f32 %v222, %v226
    %v228 = vrot.slane %v227, 2
    %v229 = vmax.f32 %v227, %v228
    %v230 = vrot.slane %v229, 1
    %v231 = vmax.f32 %v229, %v230
    %vm232 = vcmask 130048
    %v233 = vsel %vm232, %v223, -inf
    %v234 = vrot.slane %v233, 4
    %v235 = vmax.f32 %v233, %v234
    %v236 = vrot.slane %v235, 2
    %v237 = vmax.f32 %v235, %v236
    %v238 = vrot.slane %v237, 1
    %v239 = vmax.f32 %v237, %v238
    %v240 = vrot.slane %v224, 4
    %v241 = vmax.f32 %v224, %v240
    %v242 = vrot.slane %v241, 2
    %v243 = vmax.f32 %v241, %v242
    %v244 = vrot.slane %v243, 1
    %v245 = vmax.f32 %v243, %v244
    %v246 = vsel %vm232, %v225, -inf
    %v247 = vrot.slane %v246, 4
    %v248 = vmax.f32 %v246, %v247
    %v249 = vrot.slane %v248, 2
    %v250 = vmax.f32 %v248, %v249
    %v251 = vrot.slane %v250, 1
    %v252 = vmax.f32 %v250, %v251
    %v253 = vld [vmem:[%s2] sm:$0x3]
    %v255 = vlaneseq
    %v256 = vshrl.u32 %v255, 7
    %v257 = vsub.s32 0, %v256
    %v258 = vrot.slane %v253, %v257
    %v259 = vlaneseq
    %v260 = vshrl.u32 %v259, 7
    %v261 = vsub.s32 1, %v260
    %v262 = vrot.slane %v253, %v261
    %v265 = vadd.f32 %v231, %v258
    %v266 = vadd.f32 %v239, %v262
    %v267 = vadd.f32 %v245, %v258
    %v268 = vadd.f32 %v252, %v262
    %v269 = vmax.f32 %v265, 0.0
    %v270 = vmax.f32 %v266, 0.0
    %v271 = vmax.f32 %v267, 0.0
    %v272 = vmax.f32 %v268, 0.0
    %v273 = vpack.c.bf16 %v269, %v269
    %v274 = vpack.c.bf16 %v270, %v270
    %v275 = vpack.c.bf16 %v271, %v271
    %v276 = vpack.c.bf16 %v272, %v272
    %v277 = vld [vmem:[%s3] sm:$0xf]
    %v278 = vld [vmem:[%s3 + $0x4] sm:$0xf]
    %v279 = vld [vmem:[%s3 + $0x8] sm:$0xf]
    %v280 = vld [vmem:[%s3 + $0xc] sm:$0xf]
    %v281 = vld [vmem:[%s3 + $0x10] sm:$0xf]
    %v282 = vld [vmem:[%s3 + $0x14] sm:$0xf]
    %v283 = vld [vmem:[%s3 + $0x18] sm:$0xf]
    %v284 = vld [vmem:[%s3 + $0x1c] sm:$0xf]
    %v285 = vld [vmem:[%s3 + $0x20] sm:$0xf]
    %v286 = vld [vmem:[%s3 + $0x24] sm:$0xf]
    %v287 = vld [vmem:[%s3 + $0x28] sm:$0xf]
    %v288 = vld [vmem:[%s3 + $0x2c] sm:$0xf]
    %v289 = vld [vmem:[%s3 + $0x30] sm:$0xf]
    %v290 = vld [vmem:[%s3 + $0x34] sm:$0xf]
    %v291 = vld [vmem:[%s3 + $0x38] sm:$0xf]
    %v292 = vld [vmem:[%s3 + $0x3c] sm:$0xf]
    %v293 = vld [vmem:[%s3 + $0x40] sm:$0xf]
    %v294 = vld [vmem:[%s3 + $0x44] sm:$0xf]
    %v295 = vld [vmem:[%s4] sm:$0x1]
    %v297 = vlaneseq
    %v298 = vshrl.u32 %v297, 7
    %v299 = vsub.s32 0, %v298
    %v300 = vrot.slane %v295, %v299
    %v306 = vunpack.c.l.b16 %v273
    %v307 = vunpack.c.l.b16 %v274
    %v308 = vunpack.c.l.b16 %v275
    %v309 = vunpack.c.l.b16 %v276
    %v310 = vrot.slane %v308, 7
    %vm311 = vcmask 1041409
    %v312 = vsel %vm311, %v310, %v306
    %v313 = vrot.slane %v309, 7
    %v314 = vsel %vm311, %v313, %v307
    %v315 = vpack.c.b16 %v312, %v312
    %v316 = vpack.c.b16 %v314, %v314
    %v336 = vunpack.c.l.b16 %v277
    %v337 = vunpack.c.l.b16 %v278
    %v338 = vunpack.c.l.b16 %v279
    %v339 = vunpack.c.l.b16 %v280
    %v340 = vunpack.c.l.b16 %v281
    %v341 = vunpack.c.l.b16 %v282
    %v342 = vunpack.c.l.b16 %v283
    %v343 = vunpack.c.l.b16 %v284
    %v344 = vunpack.c.l.b16 %v285
    %v345 = vunpack.c.l.b16 %v286
    %v346 = vunpack.c.l.b16 %v287
    %v347 = vunpack.c.l.b16 %v288
    %v348 = vunpack.c.l.b16 %v289
    %v349 = vunpack.c.l.b16 %v290
    %v350 = vunpack.c.l.b16 %v291
    %v351 = vunpack.c.l.b16 %v292
    %v352 = vunpack.c.l.b16 %v293
    %v353 = vunpack.c.l.b16 %v294
    %v354 = vpack.c.b16 %v337, %v336
    %v355 = vpack.c.b16 %v339, %v338
    %v356 = vpack.c.b16 %v341, %v340
    %v357 = vpack.c.b16 %v343, %v342
    %v358 = vpack.c.b16 %v345, %v344
    %v359 = vpack.c.b16 %v347, %v346
    %v360 = vpack.c.b16 %v349, %v348
    %v361 = vpack.c.b16 %v351, %v350
    %v362 = vpack.c.b16 %v353, %v352
    %v373 = vsel %vm232, %v316, 0
    %375 = vmatprep.subr.bf16.mxu0 0
    %376 = vmatpush1.bf16.msra.mxu0 %v361
    %377 = vmatprep.subr.bf16.mxu0 0
    %378 = vmatpush1.bf16.msra.mxu0 %v360
    %379 = vmatprep.subr.bf16.mxu0 0
    %380 = vmatpush1.bf16.msra.mxu0 %v359
    %381 = vmatprep.subr.bf16.mxu0 0
    %382 = vmatpush1.bf16.msra.mxu0 %v358
    %383 = vmatprep.subr.bf16.mxu0 0
    %384 = vmatpush1.bf16.msra.mxu0 %v357
    %385 = vmatprep.subr.bf16.mxu0 0
    %386 = vmatpush1.bf16.msra.mxu0 %v356
    %387 = vmatprep.subr.bf16.mxu0 0
    %388 = vmatpush1.bf16.msra.mxu0 %v355
    %389 = vmatprep.subr.bf16.mxu0 0
    %390 = vmatpush1.bf16.msra.mxu0 %v354
    %391 = vmatprep.subr.bf16.mxu0 0
    %392 = vmatpush2.bf16.msra.mxu0 0
    %393 = vmatprep.subr.bf16.mxu0 0
    %394 = vmatpush2.bf16.msra.mxu0 0
    %395 = vmatprep.subr.bf16.mxu0 0
    %396 = vmatpush2.bf16.msra.mxu0 0
    %397 = vmatprep.subr.bf16.mxu0 0
    %398 = vmatpush2.bf16.msra.mxu0 0
    %399 = vmatprep.subr.bf16.mxu0 0
    %400 = vmatpush2.bf16.msra.mxu0 0
    %401 = vmatprep.subr.bf16.mxu0 0
    %402 = vmatpush2.bf16.msra.mxu0 0
    %403 = vmatprep.subr.bf16.mxu0 0
    %404 = vmatpush2.bf16.msra.mxu0 0
    %405 = vmatprep.subr.bf16.mxu0 0
    %406 = vmatpush2.bf16.msra.mxu0 %v362
    %407 = vmatprep.mubr.bf16.mxu0 %v373
    %408 = vmatmul.mubr.bf16.gmra.mxu0 %v315
    %v409 = vpop.f32.mrf.mxu0
    %v410 = vadd.f32 %v300, %v409
    %v411 = vpop.f32.mrf.mxu0
    %v412 = vpop.f32.mrf.mxu0
    %v413 = vpop.f32.mrf.mxu0
    %414 = vdwg.mxu0
    %vm415 = vcmask 17408
    %v416 = vsel %vm415, %v410, -inf
    %417 = vmax.xlane.f32.xlu0 %v416
    %v418 = vpop.xlane.xlu0 %417
    %v419 = vsub.f32 %v410, %v418
    %v420 = vmul.f32 %v419, 1.442695
    %v421 = vpow.pop %v420
    %v422 = vsel %vm415, %v421, 0.0
    %423 = vadd.xlane.f32.xlu0 %v422
    %v424 = vpop.xlane.xlu0 %423
    %v425 = vrcp.pop %v424
    %v426 = vmul.f32 %v421, %v425
    %vm427 = vcmask 23552
    %v428 = vsel %vm427, %v426, 0.0
    %429 = vst [vmem:[#allocation2] sm:$0x3] %v428
    // Predicated region
    $region26: #{opinion_conv_forward.1} parent=1 // pred_check
      _
    $region27: #{opinion_conv_forward.1} parent=1 // pred_check_branch
      %431 = sbr.rel (0) target = $region29
    $region28: #{opinion_conv_forward.1} parent=1 // pred_region
      %s433 = ssub.s32 32, 32
      %434 = vsyncadd [#allocation3], %s433
      %s436 = sshll.u32 [#allocation2], 4
      %s437 = int_to_ptr.vmem [resolvable:$true] %s436
      %439 = dma.vmem_to_hbm [thread:$0]  %s437, 32, %s6, [#allocation3]
    $region29: #{opinion_conv_forward.1} parent=1 // pred_fallthru
      _
    // Predicated region
    $region30: #{opinion_conv_forward.1} parent=1 // pred_check
      _
    $region31: #{opinion_conv_forward.1} parent=1 // pred_check_branch
      %441 = sbr.rel (0) target = $region33
    $region32: #{opinion_conv_forward.1} parent=1 // pred_region
      %442 = dma.done [#allocation3], 32
    $region33: #{opinion_conv_forward.1} parent=1 // pred_fallthru
      _
    %443 = vsyncpa [#allocation3], 1

</llo_original>
